<compile_context>
chip_gen: v7x
topology: tpu7x:2x2x1
jax: 0.10.0
libtpu: 0.0.40
codegen_flags: <defaults>
</compile_context>

<pallas_src>
import functools

import jax
import jax.numpy as jnp
from jax import lax
from jax.experimental import pallas as pl
from jax.experimental.pallas import tpu as pltpu

LANES = 128
SUBLANES = 8
# sigmoid(-30) ~ 9.4e-14 -> padded logits contribute ~0 to sum(sigmoid) and
# padded targets are 0, so neither intersection nor sum(t) sees the padding.
# (Bound: <= 1023 padded elements * 9.4e-14 < 1e-10, vs. smooth = 1.)
_PAD_LOGIT = -30.0


def _dice_kernel(x_ref, t_ref, acc_ref, *, valid_rows, block_rows,
                 blocks_per_core, full_blocks, needs_mask):
    """Accumulate per-core partials of (sum(s*t), sum(s), sum(t)).

    acc_ref is a (3, acc_rows, 128) f32 VMEM output block whose index depends
    only on the leading core axis, so it stays resident across the inner
    "arbitrary" axis and acts as a vector accumulator (VPU-only adds every
    step). The single cross-lane reduction happens once, in the wrapper.
    """
    c = pl.program_id(0)
    j = pl.program_id(1)

    @pl.when(j == 0)
    def _():
        acc_ref[...] = jnp.zeros_like(acc_ref)

    x = x_ref[...].astype(jnp.float32)
    t = t_ref[...].astype(jnp.float32)

    # sigmoid(x) = 0.5*tanh(x/2) + 0.5: single EUP push + 2 VALU ops per vreg
    # (vs. exp + exact divide = 2 EUP pushes + Newton-refined reciprocal).
    s = 0.5 * jnp.tanh(0.5 * x) + 0.5

    acc_rows = acc_ref.shape[-2]

    def fold(v):
        # (block_rows, 128) -> (acc_rows, 128): tile-aligned reshape + leading
        # axis sum = acc_rows/8 independent vreg add chains (no XLU, no scalar
        # round trip per step).
        return jnp.sum(v.reshape(-1, acc_rows, LANES), axis=0)

    def accumulate(sv, tv):
        acc_ref[0] += fold(sv * tv)   # intersection partial
        acc_ref[1] += fold(sv)        # sum(sigmoid(x)) partial
        acc_ref[2] += fold(tv)        # sum(targets) partial

    if not needs_mask:
        # Static fast path: every block slot is fully inside the array.
        accumulate(s, t)
    else:
        gidx = c * blocks_per_core + j   # UNclamped global block index

        @pl.when(gidx < full_blocks)
        def _():
            accumulate(s, t)             # fully valid block: no mask cost

        @pl.when(gidx >= full_blocks)
        def _():
            # Boundary block (partial rows) or a duplicate excess slot whose
            # index map was clamped: zero out rows past the valid row count
            # BEFORE the multiply, so garbage/NaN in the OOB region never
            # reaches the sums.
            row = gidx * block_rows + lax.broadcasted_iota(jnp.int32, x.shape, 0)
            m = row < valid_rows
            accumulate(jnp.where(m, s, 0.0), jnp.where(m, t, 0.0))


def dice_loss(inputs, targets, smooth=1.0, *, block_rows=8192, num_cores=1):
    """Pallas TPU implementation of DiceLoss.forward (returns a scalar f32).

    block_rows: rows of 128 lanes per grid step. 8192 f32 rows -> 4 MiB per
      input block, 16 MiB double-buffered for the two inputs (capped at 8192
      so the footprint stays well inside v7x's 64 MiB physical VMEM).
    num_cores: leading grid axis. Keep 1 on single-TensorCore chips
      (v5e/v6e); use 2 on v7x so both TensorCores split the HBM stream
      (switch the leading axis to pltpu.CORE_PARALLEL if xprof shows one TC
      idle with plain "parallel").
    """
    n = inputs.size
    assert targets.size == n

    xf = jnp.ravel(inputs)      # free bitcast for contiguous NCHW
    tf = jnp.ravel(targets)

    rows = max(pl.cdiv(n, LANES), SUBLANES)
    padded_n = rows * LANES
    if padded_n != n:
        # SLOW PATH: jnp.pad materializes a full HBM copy of both inputs.
        # Only taken when n is not a multiple of 128 (or n < 1024); pads at
        # most 1023 sentinel elements (value-level no-op, see _PAD_LOGIT).
        xf = jnp.pad(xf, (0, padded_n - n), constant_values=_PAD_LOGIT)
        tf = jnp.pad(tf, (0, padded_n - n), constant_values=0)
    xp = xf.reshape(rows, LANES)
    tp = tf.reshape(rows, LANES)

    # Block sizing: multiple of 8 sublanes, never larger than the array
    # (boundary blocks only overhang; they never start out of bounds).
    num_cores = max(1, int(num_cores))
    block_rows = max(SUBLANES, min(int(block_rows), 8192, rows))
    block_rows -= block_rows % SUBLANES

    total_blocks = pl.cdiv(rows, block_rows)
    num_cores = min(num_cores, total_blocks)
    blocks_per_core = pl.cdiv(total_blocks, num_cores)
    num_slots = num_cores * blocks_per_core
    full_blocks = rows // block_rows
    needs_mask = (full_blocks != total_blocks) or (num_slots != total_blocks)

    # Widest accumulator depth (<= 64 sublanes) that divides block_rows:
    # breaks the fold into independent add chains (review item #5).
    acc_rows = SUBLANES
    for cand in (64, 32, 16):
        if block_rows % cand == 0:
            acc_rows = cand
            break

    last_block = total_blocks - 1
    if num_slots == total_blocks:
        def in_map(c, j):
            return (c * blocks_per_core + j, 0)
    else:
        def in_map(c, j):
            # Excess slots (uneven core split) re-read the last real block;
            # never an out-of-bounds DMA. Their contribution is zeroed by the
            # in-kernel row mask (their unclamped index puts them past rows).
            return (jnp.minimum(c * blocks_per_core + j, last_block), 0)

    kernel = functools.partial(
        _dice_kernel,
        valid_rows=rows, block_rows=block_rows,
        blocks_per_core=blocks_per_core, full_blocks=full_blocks,
        needs_mask=needs_mask)

    partials = pl.pallas_call(
        kernel,
        out_shape=jax.ShapeDtypeStruct(
            (num_cores, 3, acc_rows, LANES), jnp.float32),
        grid=(num_cores, blocks_per_core),
        in_specs=[
            pl.BlockSpec((block_rows, LANES), in_map),
            pl.BlockSpec((block_rows, LANES), in_map),
        ],
        out_specs=pl.BlockSpec((None, 3, acc_rows, LANES),
                               lambda c, j: (c, 0, 0, 0)),
        compiler_params=pltpu.CompilerParams(
            # On v7x, swap the leading axis to pltpu.CORE_PARALLEL if xprof
            # shows the second TensorCore idle under plain "parallel".
            dimension_semantics=("parallel", "arbitrary"),
            vmem_limit_bytes=32 * 1024 * 1024,
        ),
    )(xp, tp)

    # Tiny finalize in plain XLA: one reduction over (num_cores, 3, acc_rows, 128).
    sums = jnp.sum(partials, axis=(0, 2, 3))
    inter, s_sum, t_sum = sums[0], sums[1], sums[2]
    smooth = jnp.float32(smooth)
    return 1.0 - (2.0 * inter + smooth) / (s_sum + t_sum + smooth)


def dice_loss_ref(inputs, targets, smooth=1.0):
    """Pure-JAX reference mirroring the PyTorch module."""
    s = jax.nn.sigmoid(inputs.astype(jnp.float32)).ravel()
    t = targets.astype(jnp.float32).ravel()
    inter = jnp.sum(s * t)
    return 1.0 - (2.0 * inter + smooth) / (jnp.sum(s) + jnp.sum(t) + smooth)


if __name__ == "__main__":
    key = jax.random.PRNGKey(0)
    k1, k2 = jax.random.split(key)

    # NCHW, lane-aligned size (2*4*16*16 = 2048): zero-copy fast path.
    x = jax.random.normal(k1, (2, 4, 16, 16), dtype=jnp.float32)            # logits
    t = jax.random.bernoulli(k2, 0.5, (2, 4, 16, 16)).astype(jnp.float32)   # binary targets
    loss = jax.block_until_ready(dice_loss(x, t, smooth=1.0))
    ref = jax.block_until_ready(dice_loss_ref(x, t, smooth=1.0))
    assert jnp.allclose(loss, ref, atol=3e-5, rtol=3e-5), (loss, ref)

    # Ragged size (n % 128 != 0): exercises the sentinel-pad slow path.
    x2 = jax.random.normal(k1, (1, 3, 17, 23), dtype=jnp.float32)
    t2 = jax.random.bernoulli(k2, 0.3, (1, 3, 17, 23)).astype(jnp.float32)
    loss2 = jax.block_until_ready(dice_loss(x2, t2, smooth=1.0))
    ref2 = jax.block_until_ready(dice_loss_ref(x2, t2, smooth=1.0))
    assert jnp.allclose(loss2, ref2, atol=3e-5, rtol=3e-5), (loss2, ref2)

    # Lane-aligned but not block-aligned, with num_cores=2 and a small block:
    # exercises the clamped index map, the partial boundary block and the
    # duplicate-slot masking (the multi-core / v7x code path).
    x3 = jax.random.normal(k1, (2, 4, 24, 24), dtype=jnp.float32)   # 4608 = 36*128
    t3 = jax.random.bernoulli(k2, 0.4, (2, 4, 24, 24)).astype(jnp.float32)
    loss3 = jax.block_until_ready(
        dice_loss(x3, t3, smooth=1.0, block_rows=16, num_cores=2))
    ref3 = jax.block_until_ready(dice_loss_ref(x3, t3, smooth=1.0))
    assert jnp.allclose(loss3, ref3, atol=3e-5, rtol=3e-5), (loss3, ref3)

    print("KERNEL_OK")
</pallas_src>

<mosaic_0001>
module attributes {stable_mosaic.version = 11 : i64} {
  func.func @_dice_kernel(%arg0: i32, %arg1: i32, %arg2: memref<16x128xf32, #tpu.memory_space<vmem>>, %arg3: memref<16x128xf32, #tpu.memory_space<vmem>>, %arg4: memref<1x3x16x128xf32, #tpu.memory_space<vmem>>) attributes {dimension_semantics = [#tpu.dimension_semantics<parallel>, #tpu.dimension_semantics<arbitrary>], iteration_bounds = array<i64: 1, 1>, scalar_prefetch = 0 : i64, scratch_operands = 0 : i64, tpu.core_type = #tpu.core_type<tc>, window_params = [{transform_indices = @transform_0, window_bounds = array<i64: 16, 128>}, {transform_indices = @transform_1, window_bounds = array<i64: 16, 128>}, {transform_indices = @transform_2, window_bounds = array<i64: 1, 3, 16, 128>}]} {
    %c0_i32 = arith.constant 0 : i32
    %0 = arith.cmpi eq, %arg1, %c0_i32 : i32
    %1 = arith.extui %0 : i1 to i32
    %c0_i32_0 = arith.constant 0 : i32
    %2 = arith.cmpi ne, %1, %c0_i32_0 : i32
    scf.if %2 {
      %cst_31 = arith.constant 0.000000e+00 : f32
      %37 = vector.broadcast %cst_31 : f32 to vector<3x16x128xf32>
      %c0_32 = arith.constant 0 : index
      %c0_33 = arith.constant 0 : index
      %c0_34 = arith.constant 0 : index
      %c0_35 = arith.constant 0 : index
      %38 = vector.load %arg4[%c0_32, %c0_33, %c0_34, %c0_35] : memref<1x3x16x128xf32, #tpu.memory_space<vmem>>, vector<1x3x16x128xf32>
      %39 = vector.shape_cast %38 : vector<1x3x16x128xf32> to vector<3x16x128xf32>
      %40 = vector.shape_cast %37 : vector<3x16x128xf32> to vector<1x3x16x128xf32>
      tpu.vector_store %arg4[%c0_32, %c0_33, %c0_34, %c0_35], %40 {strides = array<i32>} : memref<1x3x16x128xf32, #tpu.memory_space<vmem>>, vector<1x3x16x128xf32>,
    } else {
    }
    %c0 = arith.constant 0 : index
    %c0_1 = arith.constant 0 : index
    %3 = vector.load %arg2[%c0, %c0_1] : memref<16x128xf32, #tpu.memory_space<vmem>>, vector<16x128xf32>
    %c0_2 = arith.constant 0 : index
    %c0_3 = arith.constant 0 : index
    %4 = vector.load %arg3[%c0_2, %c0_3] : memref<16x128xf32, #tpu.memory_space<vmem>>, vector<16x128xf32>
    %cst = arith.constant 5.000000e-01 : f32
    %5 = vector.broadcast %cst : f32 to vector<16x128xf32>
    %6 = arith.mulf %5, %3 : vector<16x128xf32>
    %7 = math.tanh %6 : vector<16x128xf32>
    %cst_4 = arith.constant 5.000000e-01 : f32
    %8 = vector.broadcast %cst_4 : f32 to vector<16x128xf32>
    %9 = arith.mulf %8, %7 : vector<16x128xf32>
    %cst_5 = arith.constant 5.000000e-01 : f32
    %10 = vector.broadcast %cst_5 : f32 to vector<16x128xf32>
    %11 = arith.addf %9, %10 : vector<16x128xf32>
    %c0_6 = arith.constant 0 : index
    %c0_7 = arith.constant 0 : index
    %c0_8 = arith.constant 0 : index
    %c0_9 = arith.constant 0 : index
    %12 = vector.load %arg4[%c0_6, %c0_7, %c0_8, %c0_9] : memref<1x3x16x128xf32, #tpu.memory_space<vmem>>, vector<1x1x16x128xf32>
    %13 = vector.shape_cast %12 : vector<1x1x16x128xf32> to vector<16x128xf32>
    %14 = arith.mulf %11, %4 : vector<16x128xf32>
    %15 = vector.shape_cast %14 : vector<16x128xf32> to vector<1x16x128xf32>
    %cst_10 = arith.constant dense<0.000000e+00> : vector<16x128xf32>
    %16 = vector.multi_reduction <add>, %15, %cst_10 [0] : vector<1x16x128xf32> to vector<16x128xf32>
    %17 = arith.addf %13, %16 : vector<16x128xf32>
    %c0_11 = arith.constant 0 : index
    %c0_12 = arith.constant 0 : index
    %c0_13 = arith.constant 0 : index
    %c0_14 = arith.constant 0 : index
    %18 = vector.load %arg4[%c0_11, %c0_12, %c0_13, %c0_14] : memref<1x3x16x128xf32, #tpu.memory_space<vmem>>, vector<1x1x16x128xf32>
    %19 = vector.shape_cast %18 : vector<1x1x16x128xf32> to vector<16x128xf32>
    %20 = vector.shape_cast %17 : vector<16x128xf32> to vector<1x1x16x128xf32>
    tpu.vector_store %arg4[%c0_11, %c0_12, %c0_13, %c0_14], %20 {strides = array<i32>} : memref<1x3x16x128xf32, #tpu.memory_space<vmem>>, vector<1x1x16x128xf32>,
    %c0_15 = arith.constant 0 : index
    %c1 = arith.constant 1 : index
    %c0_16 = arith.constant 0 : index
    %c0_17 = arith.constant 0 : index
    %21 = vector.load %arg4[%c0_15, %c1, %c0_16, %c0_17] : memref<1x3x16x128xf32, #tpu.memory_space<vmem>>, vector<1x1x16x128xf32>
    %22 = vector.shape_cast %21 : vector<1x1x16x128xf32> to vector<16x128xf32>
    %23 = vector.shape_cast %11 : vector<16x128xf32> to vector<1x16x128xf32>
    %cst_18 = arith.constant dense<0.000000e+00> : vector<16x128xf32>
    %24 = vector.multi_reduction <add>, %23, %cst_18 [0] : vector<1x16x128xf32> to vector<16x128xf32>
    %25 = arith.addf %22, %24 : vector<16x128xf32>
    %c0_19 = arith.constant 0 : index
    %c1_20 = arith.constant 1 : index
    %c0_21 = arith.constant 0 : index
    %c0_22 = arith.constant 0 : index
    %26 = vector.load %arg4[%c0_19, %c1_20, %c0_21, %c0_22] : memref<1x3x16x128xf32, #tpu.memory_space<vmem>>, vector<1x1x16x128xf32>
    %27 = vector.shape_cast %26 : vector<1x1x16x128xf32> to vector<16x128xf32>
    %28 = vector.shape_cast %25 : vector<16x128xf32> to vector<1x1x16x128xf32>
    tpu.vector_store %arg4[%c0_19, %c1_20, %c0_21, %c0_22], %28 {strides = array<i32>} : memref<1x3x16x128xf32, #tpu.memory_space<vmem>>, vector<1x1x16x128xf32>,
    %c0_23 = arith.constant 0 : index
    %c2 = arith.constant 2 : index
    %c0_24 = arith.constant 0 : index
    %c0_25 = arith.constant 0 : index
    %29 = vector.load %arg4[%c0_23, %c2, %c0_24, %c0_25] : memref<1x3x16x128xf32, #tpu.memory_space<vmem>>, vector<1x1x16x128xf32>
    %30 = vector.shape_cast %29 : vector<1x1x16x128xf32> to vector<16x128xf32>
    %31 = vector.shape_cast %4 : vector<16x128xf32> to vector<1x16x128xf32>
    %cst_26 = arith.constant dense<0.000000e+00> : vector<16x128xf32>
    %32 = vector.multi_reduction <add>, %31, %cst_26 [0] : vector<1x16x128xf32> to vector<16x128xf32>
    %33 = arith.addf %30, %32 : vector<16x128xf32>
    %c0_27 = arith.constant 0 : index
    %c2_28 = arith.constant 2 : index
    %c0_29 = arith.constant 0 : index
    %c0_30 = arith.constant 0 : index
    %34 = vector.load %arg4[%c0_27, %c2_28, %c0_29, %c0_30] : memref<1x3x16x128xf32, #tpu.memory_space<vmem>>, vector<1x1x16x128xf32>
    %35 = vector.shape_cast %34 : vector<1x1x16x128xf32> to vector<16x128xf32>
    %36 = vector.shape_cast %33 : vector<16x128xf32> to vector<1x1x16x128xf32>
    tpu.vector_store %arg4[%c0_27, %c2_28, %c0_29, %c0_30], %36 {strides = array<i32>} : memref<1x3x16x128xf32, #tpu.memory_space<vmem>>, vector<1x1x16x128xf32>,
    return
  }
  func.func @transform_0(%arg0: i32, %arg1: i32) -> (i32, i32) {
    %c1_i32 = arith.constant 1 : i32
    %0 = arith.muli %arg0, %c1_i32 : i32
    %1 = arith.addi %0, %arg1 : i32
    %c0_i32 = arith.constant 0 : i32
    %c0_i32_0 = arith.constant 0 : i32
    return %1, %c0_i32 : i32, i32
  }
  func.func @transform_1(%arg0: i32, %arg1: i32) -> (i32, i32) {
    %c1_i32 = arith.constant 1 : i32
    %0 = arith.muli %arg0, %c1_i32 : i32
    %1 = arith.addi %0, %arg1 : i32
    %c0_i32 = arith.constant 0 : i32
    %c0_i32_0 = arith.constant 0 : i32
    return %1, %c0_i32 : i32, i32
  }
  func.func @transform_2(%arg0: i32, %arg1: i32) -> (i32, i32, i32, i32) {
    %c0_i32 = arith.constant 0 : i32
    %c0_i32_0 = arith.constant 0 : i32
    %c0_i32_1 = arith.constant 0 : i32
    %c0_i32_2 = arith.constant 0 : i32
    return %arg0, %c0_i32, %c0_i32_0, %c0_i32_1 : i32, i32, i32, i32
  }
}

</mosaic_0001>

<llo_original>
// kernel: tpu_custom_call.1
$region0: #{tpu_custom_call.1}
  #allocation0 [shape = 'u32[]', space=smem, size = 0x4, offset = 0x4, fixed_abs, tag = 'smem constant byte address 0x4 - core index']
  #allocation1 [shape = 'u32[144,128]{1,0:T(1,128)}', space=vmem, size = 0x12000, scoped, tag = 'internal scratch']
  %s0 = inlined_call_operand.hbm [shape: f32[16,128], index: 0, kind: input, shape index: {}]
  %s1 = inlined_call_operand.hbm [shape: f32[16,128], index: 1, kind: input, shape index: {}]
  %s2 = inlined_call_operand.hbm [shape: f32[1,3,16,128], index: 2, kind: output, shape index: {}]
  %s3 = sld [smem:[#allocation0]]
  $region30: #{tpu_custom_call.1} parent=0
    _
  %s5 = ssub.s32 1, %s3
  %s6 = scalar_select 0, %s5, %s3
  $region1: #{tpu_custom_call.1} parent=0
    #allocation2 [shape = 'u8[8192]{0}', space=vmem, size = 0x2000, scoped, tag = 'input window, operand 0, single buffered']
    #allocation3 [shape = 's32[1]{0}', space=sflag, size = 0x4, scoped, tag = 'scoped memory for tpu_custom_call.1']
    #allocation4 [shape = 's32[1]{0}', space=sflag, size = 0x4, scoped, tag = 'scoped memory for tpu_custom_call.1']
    #allocation5 [shape = 'u8[8192]{0}', space=vmem, size = 0x2000, scoped, tag = 'input window, operand 1, single buffered']
    #allocation6 [shape = 's32[1]{0}', space=sflag, size = 0x4, scoped, tag = 'scoped memory for tpu_custom_call.1']
    #allocation7 [shape = 'u8[24576]{0}', space=vmem, size = 0x6000, scoped, tag = 'output window, operand 0, single buffered']
    %7 = vsyncpa [#allocation3], 0
    %8 = vsyncpa [#allocation6], 0
    %9 = vsyncpa [#allocation4], 0
    // Predicated region
    $region2: #{tpu_custom_call.1} parent=1 // pred_check
      _
    $region3: #{tpu_custom_call.1} parent=1 // pred_check_branch
      %11 = sbr.rel (0) target = $region5
    $region4: #{tpu_custom_call.1} parent=1 // pred_region
      %s12 = sadd.s32 0, 0
      %s13 = smul.u32 2, %s12
      %s15 = ssub.s32 256, 256
      %16 = vsyncadd [#allocation3], %s15
      %s17 = smul.addr %s13, 128
      %s18 = scalar_lea.hbm %s0, %s17
      %s19 = sshll.u32 [#allocation2], 4
      %s20 = int_to_ptr.vmem [resolvable:$true] %s19
      %25 = dma.hbm_to_vmem [thread:$0]  %s18, 256, %s20, [#allocation3], 128, 128, 8
    $region5: #{tpu_custom_call.1} parent=1 // pred_fallthru
      _
    // Predicated region
    $region6: #{tpu_custom_call.1} parent=1 // pred_check
      _
    $region7: #{tpu_custom_call.1} parent=1 // pred_check_branch
      %27 = sbr.rel (0) target = $region9
    $region8: #{tpu_custom_call.1} parent=1 // pred_region
      %s28 = sadd.s32 0, 0
      %s29 = smul.u32 2, %s28
      %s31 = ssub.s32 256, 256
      %32 = vsyncadd [#allocation6], %s31
      %s33 = smul.addr %s29, 128
      %s34 = scalar_lea.hbm %s1, %s33
      %s35 = sshll.u32 [#allocation5], 4
      %s36 = int_to_ptr.vmem [resolvable:$true] %s35
      %41 = dma.hbm_to_vmem [thread:$0]  %s34, 256, %s36, [#allocation6], 128, 128, 8
    $region9: #{tpu_custom_call.1} parent=1 // pred_fallthru
      _
    // Predicated region
    $region10: #{tpu_custom_call.1} parent=1 // pred_check
      _
    $region11: #{tpu_custom_call.1} parent=1 // pred_check_branch
      %43 = sbr.rel (0) target = $region13
    $region12: #{tpu_custom_call.1} parent=1 // pred_region
      %44 = dma.done [#allocation3], 256
    $region13: #{tpu_custom_call.1} parent=1 // pred_fallthru
      _
    // Predicated region
    $region14: #{tpu_custom_call.1} parent=1 // pred_check
      _
    $region15: #{tpu_custom_call.1} parent=1 // pred_check_branch
      %46 = sbr.rel (0) target = $region17
    $region16: #{tpu_custom_call.1} parent=1 // pred_region
      %47 = dma.done [#allocation6], 256
    $region17: #{tpu_custom_call.1} parent=1 // pred_fallthru
      _
    %s48 = sadd.s32 0, 0
    %s49 = smul.u32 2, %s48
    %s50 = sadd.s32 0, 0
    %s51 = smul.u32 2, %s50
    %p52 = scmp.eq.s32.totalorder 0, 0
    // Predicated region
    $region18: #{tpu_custom_call.1} parent=1 // pred_check
      %p53 = pneg %p52
    $region19: #{tpu_custom_call.1} parent=1 // pred_check_branch
      %55 = sbr.rel (%p53) target = $region21
    $region20: #{tpu_custom_call.1} parent=1 // pred_region
      %56 = vst [vmem:[#allocation7] sm:$0xff] 0.0
      %57 = vst [vmem:[#allocation7 + $0x8] sm:$0xff] 0.0
      %58 = vst [vmem:[#allocation7 + $0x10] sm:$0xff] 0.0
      %59 = vst [vmem:[#allocation7 + $0x18] sm:$0xff] 0.0
      %60 = vst [vmem:[#allocation7 + $0x20] sm:$0xff] 0.0
      %61 = vst [vmem:[#allocation7 + $0x28] sm:$0xff] 0.0
    $region21: #{tpu_custom_call.1} parent=1 // pred_fallthru
      _
    %v62 = vld [vmem:[#allocation2] sm:$0xff]
    %v63 = vld [vmem:[#allocation2 + $0x8] sm:$0xff]
    %v64 = vld [vmem:[#allocation5] sm:$0xff]
    %v65 = vld [vmem:[#allocation5 + $0x8] sm:$0xff]
    %v66 = vmul.f32 %v62, 0.5
    %v67 = vmul.f32 %v63, 0.5
    %v68 = vtanh.pop %v66
    %v69 = vtanh.pop %v67
    %v70 = vmul.f32 %v68, 0.5
    %v71 = vmul.f32 %v69, 0.5
    %v72 = vadd.f32 %v70, 0.5
    %v73 = vadd.f32 %v71, 0.5
    %v74 = vld [vmem:[#allocation7] sm:$0xff]
    %v75 = vld [vmem:[#allocation7 + $0x8] sm:$0xff]
    %v76 = vmul.f32 %v72, %v64
    %v77 = vmul.f32 %v73, %v65
    %v78 = vadd.f32 %v76, 0.0
    %v79 = vadd.f32 %v77, 0.0
    %v80 = vadd.f32 %v74, %v78
    %v81 = vadd.f32 %v75, %v79
    %82 = vst [vmem:[#allocation7] sm:$0xff] %v80
    %83 = vst [vmem:[#allocation7 + $0x8] sm:$0xff] %v81
    %s84 = scalar_lea.vmem [#allocation7], 16
    %v85 = vld [vmem:[%s84] sm:$0xff]
    %v86 = vld [vmem:[%s84 + $0x8] sm:$0xff]
    %v87 = vadd.f32 %v72, 0.0
    %v88 = vadd.f32 %v73, 0.0
    %v89 = vadd.f32 %v85, %v87
    %v90 = vadd.f32 %v86, %v88
    %91 = vst [vmem:[%s84] sm:$0xff] %v89
    %92 = vst [vmem:[%s84 + $0x8] sm:$0xff] %v90
    %s93 = scalar_lea.vmem [#allocation7], 32
    %v94 = vld [vmem:[%s93] sm:$0xff]
    %v95 = vld [vmem:[%s93 + $0x8] sm:$0xff]
    %v96 = vadd.f32 %v64, 0.0
    %v97 = vadd.f32 %v65, 0.0
    %v98 = vadd.f32 %v94, %v96
    %v99 = vadd.f32 %v95, %v97
    %100 = vst [vmem:[%s93] sm:$0xff] %v98
    %101 = vst [vmem:[%s93 + $0x8] sm:$0xff] %v99
    // Predicated region
    $region22: #{tpu_custom_call.1} parent=1 // pred_check
      _
    $region23: #{tpu_custom_call.1} parent=1 // pred_check_branch
      %103 = sbr.rel (0) target = $region25
    $region24: #{tpu_custom_call.1} parent=1 // pred_region
      %s105 = ssub.s32 768, 768
      %106 = vsyncadd [#allocation4], %s105
      %s107 = sshll.u32 [#allocation7], 4
      %s108 = int_to_ptr.vmem [resolvable:$true] %s107
      %113 = dma.vmem_to_hbm [thread:$0]  %s108, 768, %s2, [#allocation4], 128, 128, 8
    $region25: #{tpu_custom_call.1} parent=1 // pred_fallthru
      _
    // Predicated region
    $region26: #{tpu_custom_call.1} parent=1 // pred_check
      _
    $region27: #{tpu_custom_call.1} parent=1 // pred_check_branch
      %115 = sbr.rel (0) target = $region29
    $region28: #{tpu_custom_call.1} parent=1 // pred_region
      %116 = dma.done [#allocation4], 768
    $region29: #{tpu_custom_call.1} parent=1 // pred_fallthru
      _
    %117 = vsyncpa [#allocation3], 1
    %118 = vsyncpa [#allocation6], 1
    %119 = vsyncpa [#allocation4], 1

</llo_original>
